<compile_context>
chip_gen: v7x
topology: tpu7x:2x2x1
jax: 0.10.0
libtpu: 0.0.40
codegen_flags: <defaults>
</compile_context>

<pallas_src>
import functools
import math

import jax
import jax.numpy as jnp
import numpy as np
from jax.experimental import pallas as pl
from jax.experimental.pallas import tpu as pltpu

_LANES = 128


def _quantile_loss_kernel(w_ref, pred_ref, gt_ref, out_ref, *,
                          rows_total, block_rows, sub_out):
    """One grid step = one [block_rows, C] lane-dense slab of the flat input.

    w_ref    : VMEM [2, C]            row 0: q for lane c (= quantiles[c % Q]),
                                      row 1: q - 1.  Resident (DMA'd once).
    pred_ref : VMEM [block_rows, C]   predictions (input dtype)
    gt_ref   : VMEM [block_rows, C]   targets     (input dtype)
    out_ref  : VMEM [1, sub_out, C]   per-step partial sums (f32)
    """
    i = pl.program_id(0)
    C = pred_ref.shape[1]

    # Upcast in-kernel: bf16 inputs stay bf16 in HBM/VMEM (half the DMA bytes).
    delta = gt_ref[...].astype(jnp.float32) - pred_ref[...].astype(jnp.float32)

    w = w_ref[...]
    wq, wq1 = w[0:1, :], w[1:2, :]
    # 2-op pinball (1 compare/select + 1 mul per element):
    #   q*relu(delta) + (1-q)*relu(-delta) == delta * (q if delta > 0 else q-1)
    loss = delta * jnp.where(delta > 0, wq, wq1)

    def write_partial(vals):
        if sub_out == 8:
            groups = block_rows // 8
            part = vals.reshape(groups, 8, C).sum(axis=0) if groups > 1 else vals
            out_ref[...] = part.reshape(1, 8, C)           # lane-dense slab
        else:
            out_ref[...] = jnp.sum(vals, axis=0, keepdims=True).reshape(1, 1, C)

    # Unmasked path runs on every step (pure VPU, hidden under the DMA).
    write_partial(loss)

    if rows_total % block_rows != 0:
        # Only the final grid step can see garbage (out-of-range) rows:
        # recompute its partial with a row mask and overwrite.
        @pl.when(i == pl.num_programs(0) - 1)
        def _():
            row_ids = (jax.lax.broadcasted_iota(jnp.int32, (block_rows, 1), 0)
                       + i * block_rows)
            write_partial(jnp.where(row_ids < rows_total, loss, 0.0))


def _vmem_budget_bytes():
    """Generation-aware scoped-VMEM limit (v7x: ~48 MiB, v5e/v6e: 64 MiB)."""
    try:
        cap = int(pltpu.get_tpu_info().vmem_capacity_bytes)
    except Exception:
        cap = None
    if not cap or cap <= 0:
        cap = 64 * 1024 * 1024          # conservative v7x-per-TensorCore value
    return min(64 * 1024 * 1024, (cap // 4) * 3)


def _choose_width(n, q, lane_cap):
    """Pick the lane (minor) dim C for the flat [rows, C] repack.

    Prefers a divisor of n that is a multiple of q (so one [2, C] weight table
    serves every row) and, ideally, of 128 (unmasked, fully lane-dense tiles).
    Returns (C, needs_pad).
    """
    lane_cap = max(int(lane_cap), _LANES)
    if n <= lane_cap:
        return n, False                      # whole tensor fits one row
    start = (min(lane_cap, n) // q) * q
    best_any = None
    c = start
    while c >= _LANES:
        if n % c == 0:
            if c % _LANES == 0:
                return c, False              # largest lane-aligned divisor
            if best_any is None:
                best_any = c                 # largest Q-divisible divisor
        c -= q
    if best_any is not None:
        return best_any, False
    # Rare fallback (e.g. N = Q * large_prime): zero-pad to a lane-aligned,
    # Q-divisible width.  Padded elements have delta == 0 -> loss == 0.
    base = (q * _LANES) // math.gcd(q, _LANES)
    return base * max(1, lane_cap // base), True


def _choose_block_rows(rows, c, itemsize, target_bytes, align):
    """Rows per block: ~target useful bytes, sublane-aligned, grid >= 2 steps."""
    if rows <= align:
        return rows                          # single (full-dim) block
    padded_c = ((c + _LANES - 1) // _LANES) * _LANES
    row_bytes = padded_c * itemsize
    br = max(align, (int(target_bytes) // row_bytes) // align * align)
    if br < rows:
        return br
    # Whole tensor would fit one block: split into >= 2 grid steps so the
    # "parallel" axis can be sharded across v7x's two TensorCores.
    half = -(-rows // 2)
    half = -(-half // align) * align
    return min(half, rows)


def quantile_loss(pred, gt, quantiles, *, lane_cap=4096, block_rows=None,
                  target_block_bytes=None):
    """pred, gt: [B, T, Q] float arrays; quantiles: length-Q sequence in (0,1)."""
    B, T, Q = pred.shape
    assert gt.shape == (B, T, Q)
    qs = [float(v) for v in quantiles]
    assert len(qs) == Q
    for v in qs:
        assert 0.0 < v < 1.0

    n = B * T * Q
    itemsize = jnp.dtype(pred.dtype).itemsize
    align = max(8, 32 // itemsize)           # sublane packing: f32 8, bf16 16

    C, needs_pad = _choose_width(n, Q, lane_cap)
    rows = -(-n // C)

    flat_p = pred.reshape(-1)                # free, contiguous reshapes
    flat_g = gt.reshape(-1)
    if needs_pad:
        pad = rows * C - n                   # rare: one extra HBM pass
        flat_p = jnp.pad(flat_p, (0, pad))
        flat_g = jnp.pad(flat_g, (0, pad))
    p2 = flat_p.reshape(rows, C)
    g2 = flat_g.reshape(rows, C)

    vmem_limit = _vmem_budget_bytes()
    if target_block_bytes is None:
        # 2 inputs x 2 pipeline buffers x block + weights + outputs stays well
        # inside the scoped-VMEM limit.
        target_block_bytes = max(512 * 1024, min(8 * 1024 * 1024, vmem_limit // 6))

    if block_rows is None:
        block_rows = _choose_block_rows(rows, C, itemsize, target_block_bytes,
                                        align)
    else:
        block_rows = min(int(block_rows), rows)
        assert block_rows == rows or block_rows % align == 0, (
            "block_rows must equal the row count or be sublane-aligned")

    sub_out = 8 if block_rows % 8 == 0 else 1
    grid_rows = -(-rows // block_rows)

    # Resident per-lane pinball weights: lane c -> quantiles[c % Q].
    w_row = np.tile(np.asarray(qs, dtype=np.float32), C // Q)     # [C]
    w = jnp.asarray(np.stack([w_row, w_row - 1.0], axis=0))       # [2, C]

    kernel = functools.partial(_quantile_loss_kernel, rows_total=rows,
                               block_rows=block_rows, sub_out=sub_out)

    partials = pl.pallas_call(
        kernel,
        out_shape=jax.ShapeDtypeStruct((grid_rows, sub_out, C), jnp.float32),
        grid=(grid_rows,),
        in_specs=[
            # Tiny weight table: same block every step -> DMA'd once, resident.
            pl.BlockSpec((2, C), lambda i: (0, 0)),
            pl.BlockSpec((block_rows, C), lambda i: (i, 0)),
            pl.BlockSpec((block_rows, C), lambda i: (i, 0)),
        ],
        # One lane-dense partial-sum slab per grid step; no cross-step state.
        out_specs=pl.BlockSpec((1, sub_out, C), lambda i: (i, 0, 0)),
        compiler_params=pltpu.CompilerParams(
            dimension_semantics=("parallel",),
            vmem_limit_bytes=int(vmem_limit),
        ),
    )(w, p2, g2)

    # Tiny final reduction + mean over the B*T positions.
    return jnp.sum(partials) / (B * T)


def quantile_loss_ref(pred, gt, quantiles):
    """Pure-JAX reference mirroring the PyTorch forward."""
    q = jnp.asarray(quantiles, dtype=jnp.float32)[None, None, :]   # [1,1,Q]
    delta = gt.astype(jnp.float32) - pred.astype(jnp.float32)      # [B,T,Q]
    per = q * jnp.maximum(delta, 0.0) + (1.0 - q) * jnp.maximum(-delta, 0.0)
    return jnp.mean(jnp.sum(per, axis=-1))


if __name__ == "__main__":
    quantiles = (0.1, 0.5, 0.9)
    key = jax.random.PRNGKey(0)

    def check(B, T, Q, dtype, **kw):
        k1, k2 = jax.random.split(jax.random.fold_in(key, B * 1000 + T))
        pred = jax.random.normal(k1, (B, T, Q), dtype=jnp.float32).astype(dtype)
        gt = jax.random.normal(k2, (B, T, Q), dtype=jnp.float32).astype(dtype)
        out = jax.block_until_ready(quantile_loss(pred, gt, quantiles, **kw))
        ref = jax.block_until_ready(quantile_loss_ref(pred, gt, quantiles))
        np.testing.assert_allclose(np.asarray(out), np.asarray(ref),
                                   rtol=1e-4, atol=1e-5)

    # 1) Module-sized input [B=2, T=8, Q=3]: whole tensor is one lane-dense row.
    check(2, 8, 3, jnp.float32)
    # 2) Multi-step grid with a ragged last row-block: exercises the
    #    pl.when-gated tail mask and the (8, C) partial-sum store.
    check(90, 8, 3, jnp.float32, lane_cap=160)
    # 3) Fold path (block_rows > 8): vreg-aligned VPU partial reduction.
    check(256, 8, 3, jnp.float32, lane_cap=512, block_rows=16)
    # 4) bf16 inputs: 16-row sublane packing, ragged tail, fold path.
    check(320, 8, 3, jnp.bfloat16, lane_cap=512)
    # 5) N = 3 * prime (no lane-friendly divisor): zero-pad fallback path.
    check(1499, 1, 3, jnp.float32)

    print("KERNEL_OK")
</pallas_src>

<mosaic_0001>
module attributes {stable_mosaic.version = 11 : i64} {
  func.func @_quantile_loss_kernel(%arg0: i32, %arg1: memref<2x48xf32, #tpu.memory_space<vmem>>, %arg2: memref<1x48xf32, #tpu.memory_space<vmem>>, %arg3: memref<1x48xf32, #tpu.memory_space<vmem>>, %arg4: memref<1x1x48xf32, #tpu.memory_space<vmem>>) attributes {dimension_semantics = [#tpu.dimension_semantics<parallel>], iteration_bounds = array<i64: 1>, scalar_prefetch = 0 : i64, scratch_operands = 0 : i64, tpu.core_type = #tpu.core_type<tc>, window_params = [{pipeline_mode = #tpu.pipeline_mode<synchronous>, transform_indices = @transform_0, window_bounds = array<i64: 2, 48>}, {transform_indices = @transform_1, window_bounds = array<i64: 1, 48>}, {transform_indices = @transform_2, window_bounds = array<i64: 1, 48>}, {transform_indices = @transform_3, window_bounds = array<i64: 1, 1, 48>}]} {
    %c0 = arith.constant 0 : index
    %c0_0 = arith.constant 0 : index
    %0 = vector.load %arg3[%c0, %c0_0] : memref<1x48xf32, #tpu.memory_space<vmem>>, vector<1x48xf32>
    %c0_1 = arith.constant 0 : index
    %c0_2 = arith.constant 0 : index
    %1 = vector.load %arg2[%c0_1, %c0_2] : memref<1x48xf32, #tpu.memory_space<vmem>>, vector<1x48xf32>
    %2 = arith.subf %0, %1 : vector<1x48xf32>
    %c0_3 = arith.constant 0 : index
    %c0_4 = arith.constant 0 : index
    %3 = vector.load %arg1[%c0_3, %c0_4] : memref<2x48xf32, #tpu.memory_space<vmem>>, vector<2x48xf32>
    %4 = vector.extract_strided_slice %3 {offsets = [0, 0], sizes = [1, 48], strides = [1, 1]} : vector<2x48xf32> to vector<1x48xf32>
    %5 = vector.extract_strided_slice %3 {offsets = [1, 0], sizes = [1, 48], strides = [1, 1]} : vector<2x48xf32> to vector<1x48xf32>
    %cst = arith.constant 0.000000e+00 : f32
    %6 = vector.broadcast %cst : f32 to vector<1x48xf32>
    %7 = arith.cmpf ogt, %2, %6 : vector<1x48xf32>
    %8 = arith.select %7, %4, %5 : vector<1x48xi1>, vector<1x48xf32>
    %9 = arith.mulf %2, %8 : vector<1x48xf32>
    %cst_5 = arith.constant dense<0.000000e+00> : vector<48xf32>
    %10 = vector.multi_reduction <add>, %9, %cst_5 [0] : vector<1x48xf32> to vector<48xf32>
    %11 = vector.shape_cast %10 : vector<48xf32> to vector<1x48xf32>
    %12 = vector.shape_cast %11 : vector<1x48xf32> to vector<1x1x48xf32>
    %c0_6 = arith.constant 0 : index
    %c0_7 = arith.constant 0 : index
    %c0_8 = arith.constant 0 : index
    %13 = vector.load %arg4[%c0_6, %c0_7, %c0_8] : memref<1x1x48xf32, #tpu.memory_space<vmem>>, vector<1x1x48xf32>
    tpu.vector_store %arg4[%c0_6, %c0_7, %c0_8], %12 {strides = array<i32>} : memref<1x1x48xf32, #tpu.memory_space<vmem>>, vector<1x1x48xf32>,
    return
  }
  func.func @transform_0(%arg0: i32) -> (i32, i32) {
    %c0_i32 = arith.constant 0 : i32
    %c0_i32_0 = arith.constant 0 : i32
    %c0_i32_1 = arith.constant 0 : i32
    return %c0_i32, %c0_i32_0 : i32, i32
  }
  func.func @transform_1(%arg0: i32) -> (i32, i32) {
    %c0_i32 = arith.constant 0 : i32
    %c0_i32_0 = arith.constant 0 : i32
    return %arg0, %c0_i32 : i32, i32
  }
  func.func @transform_2(%arg0: i32) -> (i32, i32) {
    %c0_i32 = arith.constant 0 : i32
    %c0_i32_0 = arith.constant 0 : i32
    return %arg0, %c0_i32 : i32, i32
  }
  func.func @transform_3(%arg0: i32) -> (i32, i32, i32) {
    %c0_i32 = arith.constant 0 : i32
    %c0_i32_0 = arith.constant 0 : i32
    %c0_i32_1 = arith.constant 0 : i32
    return %arg0, %c0_i32, %c0_i32_0 : i32, i32, i32
  }
}

</mosaic_0001>

<llo_original>
// kernel: tpu_custom_call.1
$region0: #{tpu_custom_call.1}
  #allocation0 [shape = 'u32[]', space=smem, size = 0x4, offset = 0x4, fixed_abs, tag = 'smem constant byte address 0x4 - core index']
  #allocation1 [shape = 'u32[144,128]{1,0:T(1,128)}', space=vmem, size = 0x12000, scoped, tag = 'internal scratch']
  %s0 = inlined_call_operand.hbm [shape: f32[2,48], index: 0, kind: input, shape index: {}]
  %s1 = inlined_call_operand.vmem [shape: f32[1,48], index: 1, kind: input, shape index: {}]
  %s2 = inlined_call_operand.vmem [shape: f32[1,48], index: 2, kind: input, shape index: {}]
  %s3 = inlined_call_operand.hbm [shape: f32[1,1,48], index: 3, kind: output, shape index: {}]
  %s4 = sld [smem:[#allocation0]]
  $region26: #{tpu_custom_call.1} parent=0
    _
  %s6 = ssub.s32 1, %s4
  %s7 = scalar_select 0, %s6, %s4
  $region1: #{tpu_custom_call.1} parent=0
    #allocation2 [shape = 'u8[1024]{0}', space=vmem, size = 0x400, scoped, tag = 'input window, operand 0, single buffered']
    #allocation3 [shape = 's32[1]{0}', space=sflag, size = 0x4, scoped, tag = 'scoped memory for tpu_custom_call.1']
    #allocation4 [shape = 's32[1]{0}', space=sflag, size = 0x4, scoped, tag = 'scoped memory for tpu_custom_call.1']
    #allocation5 [shape = 'u8[512]{0}', space=vmem, size = 0x400, scoped, tag = 'output window, operand 0, single buffered']
    %8 = vsyncpa [#allocation3], 0
    %9 = vsyncpa [#allocation4], 0
    // Predicated region
    $region2: #{tpu_custom_call.1} parent=1 // pred_check
      _
    $region3: #{tpu_custom_call.1} parent=1 // pred_check_branch
      %11 = sbr.rel (0) target = $region5
    $region4: #{tpu_custom_call.1} parent=1 // pred_region
      %s13 = ssub.s32 32, 32
      %14 = vsyncadd [#allocation3], %s13
      %s16 = sshll.u32 [#allocation2], 4
      %s17 = int_to_ptr.vmem [resolvable:$true] %s16
      %19 = dma.hbm_to_vmem [thread:$0]  %s0, 32, %s17, [#allocation3]
    $region5: #{tpu_custom_call.1} parent=1 // pred_fallthru
      _
    // Predicated region
    $region6: #{tpu_custom_call.1} parent=1 // pred_check
      _
    $region7: #{tpu_custom_call.1} parent=1 // pred_check_branch
      %21 = sbr.rel (0) target = $region9
    $region8: #{tpu_custom_call.1} parent=1 // pred_region
      _
    $region9: #{tpu_custom_call.1} parent=1 // pred_fallthru
      _
    // Predicated region
    $region10: #{tpu_custom_call.1} parent=1 // pred_check
      _
    $region11: #{tpu_custom_call.1} parent=1 // pred_check_branch
      %23 = sbr.rel (0) target = $region13
    $region12: #{tpu_custom_call.1} parent=1 // pred_region
      _
    $region13: #{tpu_custom_call.1} parent=1 // pred_fallthru
      _
    // Predicated region
    $region14: #{tpu_custom_call.1} parent=1 // pred_check
      _
    $region15: #{tpu_custom_call.1} parent=1 // pred_check_branch
      %25 = sbr.rel (0) target = $region17
    $region16: #{tpu_custom_call.1} parent=1 // pred_region
      %26 = dma.done [#allocation3], 32
    $region17: #{tpu_custom_call.1} parent=1 // pred_fallthru
      _
    %v27 = vld [vmem:[%s2] sm:$0x1]
    %v28 = vld [vmem:[%s1] sm:$0x1]
    %v29 = vsub.f32 %v27, %v28
    %v30 = vld [vmem:[#allocation2] sm:$0x3]
    %vm31 = vcmp.gt.f32.partialorder %v29, 0.0
    %v34 = vunpack.c.l.s4 1966171168
    %v35 = vunpack.c.0.s8 %v34
    %v36 = vlaneseq
    %v37 = vshrl.u32 %v36, 7
    %v38 = vsub.s32 %v35, %v37
    %v39 = vrot.slane %v30, %v38
    %v40 = vcombine.high %v39, %v39
    %v42 = vunpack.c.l.s4 1966171168
    %v43 = vunpack.c.0.s8 %v42
    %v44 = vlaneseq
    %v45 = vshrl.u32 %v44, 7
    %v46 = vsub.s32 %v43, %v45
    %v47 = vrot.slane %v40, %v46
    %v49 = vsel %vm31, %v30, %v47
    %v50 = vmul.f32 %v29, %v49
    %v51 = vadd.f32 %v50, 0.0
    %vm52 = vcmask 385024
    %53 = vst.msk [vmem:[#allocation5] sm:$0x1] %vm52, %v51
    // Predicated region
    $region18: #{tpu_custom_call.1} parent=1 // pred_check
      _
    $region19: #{tpu_custom_call.1} parent=1 // pred_check_branch
      %55 = sbr.rel (0) target = $region21
    $region20: #{tpu_custom_call.1} parent=1 // pred_region
      %s57 = ssub.s32 16, 16
      %58 = vsyncadd [#allocation4], %s57
      %s60 = sshll.u32 [#allocation5], 4
      %s61 = int_to_ptr.vmem [resolvable:$true] %s60
      %63 = dma.vmem_to_hbm [thread:$0]  %s61, 16, %s3, [#allocation4]
    $region21: #{tpu_custom_call.1} parent=1 // pred_fallthru
      _
    // Predicated region
    $region22: #{tpu_custom_call.1} parent=1 // pred_check
      _
    $region23: #{tpu_custom_call.1} parent=1 // pred_check_branch
      %65 = sbr.rel (0) target = $region25
    $region24: #{tpu_custom_call.1} parent=1 // pred_region
      %66 = dma.done [#allocation4], 16
    $region25: #{tpu_custom_call.1} parent=1 // pred_fallthru
      _
    %67 = vsyncpa [#allocation3], 1
    %68 = vsyncpa [#allocation4], 1

</llo_original>
